<compile_context>
chip_gen: v5e
topology: v5e:2x2
jax: 0.10.0
libtpu: 0.0.40
codegen_flags: <defaults>
</compile_context>

<pallas_src>
import jax
import jax.numpy as jnp
from jax.experimental import pallas as pl
from jax.experimental.pallas import tpu as pltpu

MAX_TILE_B = 2048  # double-buffered blocks + f32 temporaries stay well under v5e's 16 MiB


def qnet_kernel(x_ref, w1_ref, b_ref, w_ref, o_ref):
    x = x_ref[...].astype(jnp.bfloat16)            # (tile_b, 8)
    b1 = b_ref[0:1, :]                             # (1, 128) f32
    b2 = b_ref[1:2, :]
    b3 = b_ref[2:3, :]                             # cols 2..127 are zero

    # fc1 + ReLU on the MXU (K padded 4 -> 8); f32 accumulate / bias / ReLU.
    h1 = jnp.dot(x, w1_ref[...], preferred_element_type=jnp.float32)
    h1 = jnp.maximum(h1 + b1, 0.0)                 # (tile_b, 128) f32

    # fc2 + ReLU: bf16 MXU operands, f32 accumulation.
    h2 = jnp.dot(h1.astype(jnp.bfloat16), w_ref[0],
                 preferred_element_type=jnp.float32)
    h2 = jnp.maximum(h2 + b2, 0.0)                 # (tile_b, 128) f32

    # fc3: N padded to 128 (one MXU pass either way); only the 2 real output
    # columns are stored -> narrow store, tiny HBM writeback.
    out = jnp.dot(h2.astype(jnp.bfloat16), w_ref[1],
                  preferred_element_type=jnp.float32) + b3
    o_ref[...] = out[:, 0:2].astype(o_ref.dtype)


def _round_up(n, m):
    return ((n + m - 1) // m) * m


def _pack_params(w1, b1, w2, b2, w3, b3):
    """Pack params into 3 VMEM-resident slabs: bf16 w1(8,128), f32 biases(8,128),
    bf16 [w2, w3-padded] (2,128,128)."""
    w1p = jnp.zeros((8, 128), jnp.float32).at[:4, :].set(
        w1.astype(jnp.float32)).astype(jnp.bfloat16)             # K padded 4 -> 8
    b3p = jnp.zeros((1, 128), jnp.float32).at[:, :2].set(
        b3.reshape(1, 2).astype(jnp.float32))
    biases = jnp.concatenate(
        [
            b1.reshape(1, 128).astype(jnp.float32),              # row 0
            b2.reshape(1, 128).astype(jnp.float32),              # row 1
            b3p,                                                 # row 2
            jnp.zeros((5, 128), jnp.float32),                    # pad to 8 sublanes
        ],
        axis=0,
    )                                                            # (8, 128) f32
    w3p = jnp.zeros((128, 128), jnp.float32).at[:, :2].set(w3.astype(jnp.float32))
    big = jnp.stack([w2.astype(jnp.float32), w3p], axis=0).astype(jnp.bfloat16)
    return w1p, biases, big


def _pick_tile(batch):
    # Largest tile up to MAX_TILE_B, but keep >= 2 grid steps when the batch
    # allows so the "parallel" axis can shard across v7x's two TensorCores.
    return min(MAX_TILE_B, max(128, _round_up(pl.cdiv(batch, 2), 128)))


def qnet_forward(x, params, tile_b=None):
    w1, b1, w2, b2, w3, b3 = params
    B, F = x.shape
    if tile_b is None:
        tile_b = _pick_tile(B)
    n_tiles = max(1, pl.cdiv(B, tile_b))
    Bp = n_tiles * tile_b

    # Pad rows to a multiple of tile_b and features 4 -> 8 (zero cols feed the
    # MXU K=8 fc1 pass; padded rows produce values that are sliced off below).
    x = jnp.pad(x, ((0, Bp - B), (0, 8 - F))).astype(jnp.float32)

    w1p, biases, big = _pack_params(w1, b1, w2, b2, w3, b3)

    out = pl.pallas_call(
        qnet_kernel,
        out_shape=jax.ShapeDtypeStruct((Bp, 2), jnp.float32),
        grid=(n_tiles,),
        in_specs=[
            pl.BlockSpec((tile_b, 8), lambda i: (i, 0)),          # x: batch-tiled
            pl.BlockSpec((8, 128), lambda i: (0, 0)),             # bf16 w1 slab (resident)
            pl.BlockSpec((8, 128), lambda i: (0, 0)),             # f32 bias slab (resident)
            pl.BlockSpec((2, 128, 128), lambda i: (0, 0, 0)),     # bf16 w2/w3 slab (resident)
        ],
        out_specs=pl.BlockSpec((tile_b, 2), lambda i: (i, 0)),    # narrow (B,2) writeback
        compiler_params=pltpu.CompilerParams(
            dimension_semantics=("parallel",),
        ),
    )(x, w1p, biases, big)

    return out[:B]


def init_params(key):
    k1, k2, k3, k4, k5, k6 = jax.random.split(key, 6)
    # (in_features, out_features) so forward is x @ W + b (matches nn.Linear math)
    w1 = jax.random.normal(k1, (4, 128), jnp.float32) * 0.1
    b1 = jax.random.normal(k2, (1, 128), jnp.float32) * 0.1
    w2 = jax.random.normal(k3, (128, 128), jnp.float32) * 0.1
    b2 = jax.random.normal(k4, (1, 128), jnp.float32) * 0.1
    w3 = jax.random.normal(k5, (128, 2), jnp.float32) * 0.1
    b3 = jax.random.normal(k6, (1, 2), jnp.float32) * 0.1
    return w1, b1, w2, b2, w3, b3


def qnet_reference(x, params):
    w1, b1, w2, b2, w3, b3 = params
    h1 = jnp.maximum(x @ w1 + b1, 0.0)
    h2 = jnp.maximum(h1 @ w2 + b2, 0.0)
    return h2 @ w3 + b3


# TODO(synk): Qnet.sample_action (host-side epsilon-greedy with python random)
# is control flow outside the forward pass and is not implemented as a kernel.

if __name__ == "__main__":
    key = jax.random.PRNGKey(0)
    k_x, k_p = jax.random.split(key)

    batch = 500  # not a multiple of the tile: exercises padding + 2 grid steps
    x = jax.random.normal(k_x, (batch, 4), jnp.float32)  # CartPole-style observations
    params = init_params(k_p)

    out = qnet_forward(x, params)
    out = jax.block_until_ready(out)

    ref = qnet_reference(x, params)
    assert out.shape == (batch, 2), out.shape
    # bf16 MXU operands (f32 accumulate) vs f32 reference -> loosened tolerance.
    assert jnp.allclose(out, ref, atol=2e-2, rtol=2e-2), (
        f"max err {jnp.max(jnp.abs(out - ref))}"
    )
    print("KERNEL_OK")
</pallas_src>

<mosaic_0001>
module attributes {stable_mosaic.version = 11 : i64} {
  func.func @qnet_kernel(%arg0: i32, %arg1: memref<256x8xf32, #tpu.memory_space<vmem>>, %arg2: memref<8x128xbf16, #tpu.memory_space<vmem>>, %arg3: memref<8x128xf32, #tpu.memory_space<vmem>>, %arg4: memref<2x128x128xbf16, #tpu.memory_space<vmem>>, %arg5: memref<256x2xf32, #tpu.memory_space<vmem>>) attributes {dimension_semantics = [#tpu.dimension_semantics<parallel>], iteration_bounds = array<i64: 2>, scalar_prefetch = 0 : i64, scratch_operands = 0 : i64, tpu.core_type = #tpu.core_type<tc>, window_params = [{transform_indices = @transform_0, window_bounds = array<i64: 256, 8>}, {pipeline_mode = #tpu.pipeline_mode<synchronous>, transform_indices = @transform_1, window_bounds = array<i64: 8, 128>}, {pipeline_mode = #tpu.pipeline_mode<synchronous>, transform_indices = @transform_2, window_bounds = array<i64: 8, 128>}, {pipeline_mode = #tpu.pipeline_mode<synchronous>, transform_indices = @transform_3, window_bounds = array<i64: 2, 128, 128>}, {transform_indices = @transform_4, window_bounds = array<i64: 256, 2>}]} {
    %c0 = arith.constant 0 : index
    %c0_0 = arith.constant 0 : index
    %0 = vector.load %arg1[%c0, %c0_0] : memref<256x8xf32, #tpu.memory_space<vmem>>, vector<256x8xf32>
    %1 = arith.truncf %0 : vector<256x8xf32> to vector<256x8xbf16>
    %c0_1 = arith.constant 0 : index
    %c0_2 = arith.constant 0 : index
    %2 = vector.load %arg3[%c0_1, %c0_2] : memref<8x128xf32, #tpu.memory_space<vmem>>, vector<1x128xf32>
    %c1 = arith.constant 1 : index
    %c0_3 = arith.constant 0 : index
    %3 = vector.load %arg3[%c1, %c0_3] : memref<8x128xf32, #tpu.memory_space<vmem>>, vector<1x128xf32>
    %c2 = arith.constant 2 : index
    %c0_4 = arith.constant 0 : index
    %4 = vector.load %arg3[%c2, %c0_4] : memref<8x128xf32, #tpu.memory_space<vmem>>, vector<1x128xf32>
    %c0_5 = arith.constant 0 : index
    %c0_6 = arith.constant 0 : index
    %5 = vector.load %arg2[%c0_5, %c0_6] : memref<8x128xbf16, #tpu.memory_space<vmem>>, vector<8x128xbf16>
    %cst = arith.constant dense<0.000000e+00> : vector<256x128xf32>
    %6 = tpu.matmul %1, %5, %cst {dimension_numbers = #tpu.dot_dimension_numbers<[1], [0], [0], [1], [0, 0, 1, 1], [], []>} : vector<256x8xbf16>, vector<8x128xbf16>, vector<256x128xf32> -> vector<256x128xf32>
    %7 = vector.broadcast %2 : vector<1x128xf32> to vector<256x128xf32>
    %8 = arith.addf %6, %7 : vector<256x128xf32>
    %cst_7 = arith.constant 0.000000e+00 : f32
    %9 = vector.broadcast %cst_7 : f32 to vector<256x128xf32>
    %10 = arith.maximumf %8, %9 : vector<256x128xf32>
    %11 = arith.truncf %10 : vector<256x128xf32> to vector<256x128xbf16>
    %c0_8 = arith.constant 0 : index
    %c0_9 = arith.constant 0 : index
    %c0_10 = arith.constant 0 : index
    %12 = vector.load %arg4[%c0_8, %c0_9, %c0_10] : memref<2x128x128xbf16, #tpu.memory_space<vmem>>, vector<1x128x128xbf16>
    %13 = vector.shape_cast %12 : vector<1x128x128xbf16> to vector<128x128xbf16>
    %cst_11 = arith.constant dense<0.000000e+00> : vector<256x128xf32>
    %14 = tpu.matmul %11, %13, %cst_11 {dimension_numbers = #tpu.dot_dimension_numbers<[1], [0], [0], [1], [0, 0, 1, 1], [], []>} : vector<256x128xbf16>, vector<128x128xbf16>, vector<256x128xf32> -> vector<256x128xf32>
    %15 = vector.broadcast %3 : vector<1x128xf32> to vector<256x128xf32>
    %16 = arith.addf %14, %15 : vector<256x128xf32>
    %cst_12 = arith.constant 0.000000e+00 : f32
    %17 = vector.broadcast %cst_12 : f32 to vector<256x128xf32>
    %18 = arith.maximumf %16, %17 : vector<256x128xf32>
    %19 = arith.truncf %18 : vector<256x128xf32> to vector<256x128xbf16>
    %c1_13 = arith.constant 1 : index
    %c0_14 = arith.constant 0 : index
    %c0_15 = arith.constant 0 : index
    %20 = vector.load %arg4[%c1_13, %c0_14, %c0_15] : memref<2x128x128xbf16, #tpu.memory_space<vmem>>, vector<1x128x128xbf16>
    %21 = vector.shape_cast %20 : vector<1x128x128xbf16> to vector<128x128xbf16>
    %cst_16 = arith.constant dense<0.000000e+00> : vector<256x128xf32>
    %22 = tpu.matmul %19, %21, %cst_16 {dimension_numbers = #tpu.dot_dimension_numbers<[1], [0], [0], [1], [0, 0, 1, 1], [], []>} : vector<256x128xbf16>, vector<128x128xbf16>, vector<256x128xf32> -> vector<256x128xf32>
    %23 = vector.broadcast %4 : vector<1x128xf32> to vector<256x128xf32>
    %24 = arith.addf %22, %23 : vector<256x128xf32>
    %25 = vector.extract_strided_slice %24 {offsets = [0, 0], sizes = [256, 2], strides = [1, 1]} : vector<256x128xf32> to vector<256x2xf32>
    %c0_17 = arith.constant 0 : index
    %c0_18 = arith.constant 0 : index
    %26 = vector.load %arg5[%c0_17, %c0_18] : memref<256x2xf32, #tpu.memory_space<vmem>>, vector<256x2xf32>
    tpu.vector_store %arg5[%c0_17, %c0_18], %25 {strides = array<i32>} : memref<256x2xf32, #tpu.memory_space<vmem>>, vector<256x2xf32>,
    return
  }
  func.func @transform_0(%arg0: i32) -> (i32, i32) {
    %c0_i32 = arith.constant 0 : i32
    %c0_i32_0 = arith.constant 0 : i32
    return %arg0, %c0_i32 : i32, i32
  }
  func.func @transform_1(%arg0: i32) -> (i32, i32) {
    %c0_i32 = arith.constant 0 : i32
    %c0_i32_0 = arith.constant 0 : i32
    %c0_i32_1 = arith.constant 0 : i32
    return %c0_i32, %c0_i32_0 : i32, i32
  }
  func.func @transform_2(%arg0: i32) -> (i32, i32) {
    %c0_i32 = arith.constant 0 : i32
    %c0_i32_0 = arith.constant 0 : i32
    %c0_i32_1 = arith.constant 0 : i32
    return %c0_i32, %c0_i32_0 : i32, i32
  }
  func.func @transform_3(%arg0: i32) -> (i32, i32, i32) {
    %c0_i32 = arith.constant 0 : i32
    %c0_i32_0 = arith.constant 0 : i32
    %c0_i32_1 = arith.constant 0 : i32
    %c0_i32_2 = arith.constant 0 : i32
    return %c0_i32, %c0_i32_0, %c0_i32_1 : i32, i32, i32
  }
  func.func @transform_4(%arg0: i32) -> (i32, i32) {
    %c0_i32 = arith.constant 0 : i32
    %c0_i32_0 = arith.constant 0 : i32
    return %arg0, %c0_i32 : i32, i32
  }
}

</mosaic_0001>

<llo_original>
// kernel: tpu_custom_call.1
$region0: #{tpu_custom_call.1}
  #allocation0 [shape = 'u32[]', space=smem, size = 0x4, offset = 0x4, fixed_abs, tag = 'smem constant byte address 0x4 - core index']
  #allocation1 [shape = 'u32[72,128]{1,0:T(1,128)}', space=vmem, size = 0x9000, scoped, tag = 'internal scratch']
  %s0 = inlined_call_operand.vmem [shape: f32[512,8], index: 0, kind: input, shape index: {}]
  %s1 = inlined_call_operand.vmem [shape: bf16[8,128], index: 1, kind: input, shape index: {}]
  %s2 = inlined_call_operand.vmem [shape: f32[8,128], index: 2, kind: input, shape index: {}]
  %s3 = inlined_call_operand.vmem [shape: bf16[2,128,128], index: 3, kind: input, shape index: {}]
  %s4 = inlined_call_operand.vmem [shape: f32[512,2], index: 4, kind: output, shape index: {}]
  %s5 = sld [smem:[#allocation0]]
  $region49: #{tpu_custom_call.1} parent=0
    _
  %s7 = ssub.s32 1, %s5
  %s8 = scalar_select 0, %s7, %s5
  loop: start=0, step=1, limit=4
  $region2: #{tpu_custom_call.1} parent=0 // loop_pre_header
    _
  $region3: #{tpu_custom_call.1} parent=0 // loop_header
    %s10 = sphi 0, %s14
    %p11 = scmp.ge.s32.totalorder %s10, 4
    %s20 = sphi 0, %s22
    %s23 = sphi 0, %s20
    %s24 = sphi 0, %s23
    %s40 = sphi 0, %s24
    %s44 = sphi 0, %s44
    %s46 = sphi 0, %s44
    %s47 = sphi 0, %s46
    %s61 = sphi 0, %s47
    %s65 = sphi 0, %s65
    %s67 = sphi 0, %s65
    %s68 = sphi 0, %s67
    %s82 = sphi 0, %s68
    %s86 = sphi 0, %s86
    %s88 = sphi 0, %s86
    %s89 = sphi 0, %s88
    %s103 = sphi 0, %s89
    %s109 = sphi 0, %s111
    %s112 = sphi 0, %s109
    %s113 = sphi 0, %s112
    %s129 = sphi 0, %s113
  $region4: #{tpu_custom_call.1} parent=0 // loop_header_branch
    %13 = sbr.rel (%p11) target = $region8
  $region5: #{tpu_custom_call.1} parent=0 // loop_body
    %s15 = ssub.s32 %s10, 1
    %s16 = ssub.s32 %s10, 2
    %s17 = sadd.s32 %s10, 1
    %s18 = ssub.s32 %s10, %s17
    %p19 = scmp.eq.s32.totalorder %s18, 0
    %s21 = sadd.s32 %s20, 1
    %s22 = scalar_select %p19, %s20, %s21
    %p25 = pneg %p19
    %p26 = scmp.eq.s32.totalorder %s10, 1
    %p27 = por %p25, %p26
    %p28 = scmp.ne.s32.totalorder %s20, %s23
    %p29 = scmp.eq.s32.totalorder %s10, 0
    %p30 = por %p28, %p29
    %p31 = scmp.ne.s32.totalorder %s20, %s23
    %p32 = scmp.eq.s32.totalorder %s15, 1
    %p33 = por %p31, %p32
    %p34 = scmp.ne.s32.totalorder %s23, %s24
    %p35 = scmp.eq.s32.totalorder %s15, 0
    %p36 = por %p34, %p35
    %p37 = scmp.ne.s32.totalorder %s23, %s24
    %p38 = scmp.eq.s32.totalorder %s16, 1
    %p39 = por %p37, %p38
    %p41 = scmp.ne.s32.totalorder %s24, %s40
    %p42 = scmp.eq.s32.totalorder %s16, 0
    %p43 = por %p41, %p42
    %s45 = sadd.s32 %s44, 1
    %p48 = scmp.eq.s32.totalorder %s10, 1
    %p49 = scmp.ne.s32.totalorder %s44, %s46
    %p50 = scmp.eq.s32.totalorder %s10, 0
    %p51 = por %p49, %p50
    %p52 = scmp.ne.s32.totalorder %s44, %s46
    %p53 = scmp.eq.s32.totalorder %s15, 1
    %p54 = por %p52, %p53
    %p55 = scmp.ne.s32.totalorder %s46, %s47
    %p56 = scmp.eq.s32.totalorder %s15, 0
    %p57 = por %p55, %p56
    %p58 = scmp.ne.s32.totalorder %s46, %s47
    %p59 = scmp.eq.s32.totalorder %s16, 1
    %p60 = por %p58, %p59
    %p62 = scmp.ne.s32.totalorder %s47, %s61
    %p63 = scmp.eq.s32.totalorder %s16, 0
    %p64 = por %p62, %p63
    %s66 = sadd.s32 %s65, 1
    %p69 = scmp.eq.s32.totalorder %s10, 1
    %p70 = scmp.ne.s32.totalorder %s65, %s67
    %p71 = scmp.eq.s32.totalorder %s10, 0
    %p72 = por %p70, %p71
    %p73 = scmp.ne.s32.totalorder %s65, %s67
    %p74 = scmp.eq.s32.totalorder %s15, 1
    %p75 = por %p73, %p74
    %p76 = scmp.ne.s32.totalorder %s67, %s68
    %p77 = scmp.eq.s32.totalorder %s15, 0
    %p78 = por %p76, %p77
    %p79 = scmp.ne.s32.totalorder %s67, %s68
    %p80 = scmp.eq.s32.totalorder %s16, 1
    %p81 = por %p79, %p80
    %p83 = scmp.ne.s32.totalorder %s68, %s82
    %p84 = scmp.eq.s32.totalorder %s16, 0
    %p85 = por %p83, %p84
    %s87 = sadd.s32 %s86, 1
    %p90 = scmp.eq.s32.totalorder %s10, 1
    %p91 = scmp.ne.s32.totalorder %s86, %s88
    %p92 = scmp.eq.s32.totalorder %s10, 0
    %p93 = por %p91, %p92
    %p94 = scmp.ne.s32.totalorder %s86, %s88
    %p95 = scmp.eq.s32.totalorder %s15, 1
    %p96 = por %p94, %p95
    %p97 = scmp.ne.s32.totalorder %s88, %s89
    %p98 = scmp.eq.s32.totalorder %s15, 0
    %p99 = por %p97, %p98
    %p100 = scmp.ne.s32.totalorder %s88, %s89
    %p101 = scmp.eq.s32.totalorder %s16, 1
    %p102 = por %p100, %p101
    %p104 = scmp.ne.s32.totalorder %s89, %s103
    %p105 = scmp.eq.s32.totalorder %s16, 0
    %p106 = por %p104, %p105
    %s107 = ssub.s32 %s10, %s17
    %p108 = scmp.eq.s32.totalorder %s107, 0
    %s110 = sadd.s32 %s109, 1
    %s111 = scalar_select %p108, %s109, %s110
    %p114 = pneg %p108
    %p115 = scmp.eq.s32.totalorder %s10, 1
    %p116 = por %p114, %p115
    %p117 = scmp.ne.s32.totalorder %s109, %s112
    %p118 = scmp.eq.s32.totalorder %s10, 0
    %p119 = por %p117, %p118
    %p120 = scmp.ne.s32.totalorder %s109, %s112
    %p121 = scmp.eq.s32.totalorder %s15, 1
    %p122 = por %p120, %p121
    %p123 = scmp.ne.s32.totalorder %s112, %s113
    %p124 = scmp.eq.s32.totalorder %s15, 0
    %p125 = por %p123, %p124
    %p126 = scmp.ne.s32.totalorder %s112, %s113
    %p127 = scmp.eq.s32.totalorder %s16, 1
    %p128 = por %p126, %p127
    %p130 = scmp.ne.s32.totalorder %s113, %s129
    %p131 = scmp.eq.s32.totalorder %s16, 0
    %p132 = por %p130, %p131
    %p133 = scmp.le.s32.totalorder 1, %s10
    %p134 = scmp.lt.s32.totalorder %s10, 3
    %p135 = pnand %p133, %p134
    %p136 = pneg %p135
    // Predicated region
    $region9: #{tpu_custom_call.1} parent=5 // pred_check
      _
    $region10: #{tpu_custom_call.1} parent=5 // pred_check_branch
      %138 = sbr.rel (%p135) target = $region12
    $region11: #{tpu_custom_call.1} parent=5 // pred_region
      %s139 = ssub.s32 %s10, 1
      // Predicated region
      $region13: #{tpu_custom_call.1} parent=11 // pred_check
        %p140 = pneg %p57
      $region14: #{tpu_custom_call.1} parent=11 // pred_check_branch
        %142 = sbr.rel (%p140) target = $region16
      $region15: #{tpu_custom_call.1} parent=11 // pred_region
        _
      $region16: #{tpu_custom_call.1} parent=11 // pred_fallthru
        _
      // Predicated region
      $region17: #{tpu_custom_call.1} parent=11 // pred_check
        %p143 = pneg %p78
      $region18: #{tpu_custom_call.1} parent=11 // pred_check_branch
        %145 = sbr.rel (%p143) target = $region20
      $region19: #{tpu_custom_call.1} parent=11 // pred_region
        _
      $region20: #{tpu_custom_call.1} parent=11 // pred_fallthru
        _
      // Predicated region
      $region21: #{tpu_custom_call.1} parent=11 // pred_check
        %p146 = pneg %p99
      $region22: #{tpu_custom_call.1} parent=11 // pred_check_branch
        %148 = sbr.rel (%p146) target = $region24
      $region23: #{tpu_custom_call.1} parent=11 // pred_region
        _
      $region24: #{tpu_custom_call.1} parent=11 // pred_fallthru
        _
    $region12: #{tpu_custom_call.1} parent=5 // pred_fallthru
      _
    %p149 = scmp.lt.s32.totalorder %s10, 2
    // Predicated region
    $region25: #{tpu_custom_call.1} parent=5 // pred_check
      %p150 = pneg %p149
    $region26: #{tpu_custom_call.1} parent=5 // pred_check_branch
      %152 = sbr.rel (%p150) target = $region28
    $region27: #{tpu_custom_call.1} parent=5 // pred_region
      // Predicated region
      $region29: #{tpu_custom_call.1} parent=27 // pred_check
        %p153 = pneg %p30
      $region30: #{tpu_custom_call.1} parent=27 // pred_check_branch
        %155 = sbr.rel (%p153) target = $region32
      $region31: #{tpu_custom_call.1} parent=27 // pred_region
        %s156 = smul.u32 32, %s10
        %p157 = scmp.lt.s32.totalorder %s156, 63
        %s158 = scalar_select %p157, %s156, 63
        %s159 = smul.addr %s158, 8
        %s160 = scalar_lea.vmem %s0, %s159
        %s161 = smul.u32 32, %s10
      $region32: #{tpu_custom_call.1} parent=27 // pred_fallthru
        _
    $region28: #{tpu_custom_call.1} parent=5 // pred_fallthru
      _
    %p162 = scmp.le.s32.totalorder 1, %s10
    %p163 = scmp.lt.s32.totalorder %s10, 3
    %p164 = pnand %p162, %p163
    %p165 = pneg %p164
    // Predicated region
    $region33: #{tpu_custom_call.1} parent=5 // pred_check
      _
    $region34: #{tpu_custom_call.1} parent=5 // pred_check_branch
      %167 = sbr.rel (%p164) target = $region36
    $region35: #{tpu_custom_call.1} parent=5 // pred_region
      %s168 = ssub.s32 %s10, 1
      %s169 = smul.u32 32, %s15
      %p170 = scmp.lt.s32.totalorder %s169, 63
      %s171 = scalar_select %p170, %s169, 63
      %s172 = smul.addr %s171, 8
      %s173 = scalar_lea.vmem %s0, %s172
      %p174 = pneg %p36
      %p175 = pneg %p33
      %p176 = pneg %p57
      %p177 = pneg %p54
      %p178 = pneg %p78
      %p179 = pneg %p75
      %p180 = pneg %p99
      %p181 = pneg %p96
      %p182 = pneg %p125
      %p183 = pneg %p122
      %s184 = smul.u32 32, %s15
      %p185 = scmp.lt.s32.totalorder %s184, 63
      %s186 = scalar_select %p185, %s184, 63
      %s187 = smul.addr %s186, 8
      %s188 = scalar_lea.vmem %s4, %s187
      %s189 = smul.u32 32, %s15
      %p190 = scmp.lt.s32.totalorder %s189, 63
      %s191 = scalar_select %p190, %s189, 63
      %s192 = smul.addr %s191, 8
      %s193 = scalar_lea.vmem %s0, %s192
      %s194 = smul.u32 32, %s15
      %s195 = smul.u32 32, %s15
      %p196 = scmp.lt.s32.totalorder %s195, 63
      %s197 = scalar_select %p196, %s195, 63
      %s198 = smul.addr %s197, 8
      %s199 = scalar_lea.vmem %s4, %s198
      %s200 = smul.u32 32, %s15
      %v202 = vld [vmem:[%s193] sm:$0xff]
      %v203 = vld [vmem:[%s193 + $0x8] sm:$0xff]
      %v204 = vld [vmem:[%s193 + $0x10] sm:$0xff]
      %v205 = vld [vmem:[%s193 + $0x18] sm:$0xff]
      %v206 = vld [vmem:[%s193 + $0x20] sm:$0xff]
      %v207 = vld [vmem:[%s193 + $0x28] sm:$0xff]
      %v208 = vld [vmem:[%s193 + $0x30] sm:$0xff]
      %v209 = vld [vmem:[%s193 + $0x38] sm:$0xff]
      %v210 = vld [vmem:[%s193 + $0x40] sm:$0xff]
      %v211 = vld [vmem:[%s193 + $0x48] sm:$0xff]
      %v212 = vld [vmem:[%s193 + $0x50] sm:$0xff]
      %v213 = vld [vmem:[%s193 + $0x58] sm:$0xff]
      %v214 = vld [vmem:[%s193 + $0x60] sm:$0xff]
      %v215 = vld [vmem:[%s193 + $0x68] sm:$0xff]
      %v216 = vld [vmem:[%s193 + $0x70] sm:$0xff]
      %v217 = vld [vmem:[%s193 + $0x78] sm:$0xff]
      %v218 = vld [vmem:[%s193 + $0x80] sm:$0xff]
      %v219 = vld [vmem:[%s193 + $0x88] sm:$0xff]
      %v220 = vld [vmem:[%s193 + $0x90] sm:$0xff]
      %v221 = vld [vmem:[%s193 + $0x98] sm:$0xff]
      %v222 = vld [vmem:[%s193 + $0xa0] sm:$0xff]
      %v223 = vld [vmem:[%s193 + $0xa8] sm:$0xff]
      %v224 = vld [vmem:[%s193 + $0xb0] sm:$0xff]
      %v225 = vld [vmem:[%s193 + $0xb8] sm:$0xff]
      %v226 = vld [vmem:[%s193 + $0xc0] sm:$0xff]
      %v227 = vld [vmem:[%s193 + $0xc8] sm:$0xff]
      %v228 = vld [vmem:[%s193 + $0xd0] sm:$0xff]
      %v229 = vld [vmem:[%s193 + $0xd8] sm:$0xff]
      %v230 = vld [vmem:[%s193 + $0xe0] sm:$0xff]
      %v231 = vld [vmem:[%s193 + $0xe8] sm:$0xff]
      %v232 = vld [vmem:[%s193 + $0xf0] sm:$0xff]
      %v233 = vld [vmem:[%s193 + $0xf8] sm:$0xff]
      %v234 = vpack.c.bf16 %v203, %v202
      %v235 = vpack.c.bf16 %v205, %v204
      %v236 = vpack.c.bf16 %v207, %v206
      %v237 = vpack.c.bf16 %v209, %v208
      %v238 = vpack.c.bf16 %v211, %v210
      %v239 = vpack.c.bf16 %v213, %v212
      %v240 = vpack.c.bf16 %v215, %v214
      %v241 = vpack.c.bf16 %v217, %v216
      %v242 = vpack.c.bf16 %v219, %v218
      %v243 = vpack.c.bf16 %v221, %v220
      %v244 = vpack.c.bf16 %v223, %v222
      %v245 = vpack.c.bf16 %v225, %v224
      %v246 = vpack.c.bf16 %v227, %v226
      %v247 = vpack.c.bf16 %v229, %v228
      %v248 = vpack.c.bf16 %v231, %v230
      %v249 = vpack.c.bf16 %v233, %v232
      %v250 = vld [vmem:[%s2] sm:$0x1]
      %v251 = vld [vmem:[%s2 + $0x1] sm:$0x1]
      %v252 = vld [vmem:[%s2 + $0x2] sm:$0x1]
      %v253 = vld [vmem:[%s1] sm:$0xf]
      %v254 = vperm.slane %v250, 0
      %vm255 = vcmask 64512
      %v257 = vsel %vm255, %v234, 0
      %v260 = vsel %vm255, %v235, 0
      %v263 = vsel %vm255, %v236, 0
      %v266 = vsel %vm255, %v237, 0
      %v269 = vsel %vm255, %v238, 0
      %v272 = vsel %vm255, %v239, 0
      %v275 = vsel %vm255, %v240, 0
      %v278 = vsel %vm255, %v241, 0
      %v281 = vsel %vm255, %v242, 0
      %v284 = vsel %vm255, %v243, 0
      %v287 = vsel %vm255, %v244, 0
      %v290 = vsel %vm255, %v245, 0
      %v293 = vsel %vm255, %v246, 0
      %v296 = vsel %vm255, %v247, 0
      %v299 = vsel %vm255, %v248, 0
      %v302 = vsel %vm255, %v249, 0
      %vm304 = vcmask 1043456
      %v306 = vsel %vm304, %v253, 0
      %308 = vmatpush.bf16.msra.mxu0 0
      %309 = vmatpush.bf16.msra.mxu0 0
      %310 = vmatpush.bf16.msra.mxu0 0
      %311 = vmatpush.bf16.msra.mxu0 0
      %312 = vmatpush.bf16.msra.mxu0 0
      %313 = vmatpush.bf16.msra.mxu0 0
      %314 = vmatpush.bf16.msra.mxu0 0
      %315 = vmatpush.bf16.msra.mxu0 %v306
      %316 = vmatmul.bf16.gmra.mxu0 %v257
      %v317 = vpop.f32.mrf.mxu0
      %v318 = vadd.f32 %v254, %v317
      %v319 = vpop.f32.mrf.mxu0
      %v320 = vadd.f32 %v254, %v319
      %321 = vmatmul.bf16.gmra.mxu0 %v260
      %v322 = vpop.f32.mrf.mxu0
      %v323 = vadd.f32 %v254, %v322
      %v324 = vpop.f32.mrf.mxu0
      %v325 = vadd.f32 %v254, %v324
      %326 = vmatmul.bf16.gmra.mxu0 %v263
      %v327 = vpop.f32.mrf.mxu0
      %v328 = vadd.f32 %v254, %v327
      %v329 = vpop.f32.mrf.mxu0
      %v330 = vadd.f32 %v254, %v329
      %331 = vmatmul.bf16.gmra.mxu0 %v266
      %v332 = vpop.f32.mrf.mxu0
      %v333 = vadd.f32 %v254, %v332
      %v334 = vpop.f32.mrf.mxu0
      %v335 = vadd.f32 %v254, %v334
      %336 = vmatmul.bf16.gmra.mxu0 %v269
      %v337 = vpop.f32.mrf.mxu0
      %v338 = vadd.f32 %v254, %v337
      %v339 = vpop.f32.mrf.mxu0
      %v340 = vadd.f32 %v254, %v339
      %341 = vmatmul.bf16.gmra.mxu0 %v272
      %v342 = vpop.f32.mrf.mxu0
      %v343 = vadd.f32 %v254, %v342
      %v344 = vpop.f32.mrf.mxu0
      %v345 = vadd.f32 %v254, %v344
      %346 = vmatmul.bf16.gmra.mxu0 %v275
      %v347 = vpop.f32.mrf.mxu0
      %v348 = vadd.f32 %v254, %v347
      %v349 = vpop.f32.mrf.mxu0
      %v350 = vadd.f32 %v254, %v349
      %351 = vmatmul.bf16.gmra.mxu0 %v278
      %v352 = vpop.f32.mrf.mxu0
      %v353 = vadd.f32 %v254, %v352
      %v354 = vpop.f32.mrf.mxu0
      %v355 = vadd.f32 %v254, %v354
      %356 = vmatmul.bf16.gmra.mxu0 %v281
      %v357 = vpop.f32.mrf.mxu0
      %v358 = vadd.f32 %v254, %v357
      %v359 = vpop.f32.mrf.mxu0
      %v360 = vadd.f32 %v254, %v359
      %361 = vmatmul.bf16.gmra.mxu0 %v284
      %v362 = vpop.f32.mrf.mxu0
      %v363 = vadd.f32 %v254, %v362
      %v364 = vpop.f32.mrf.mxu0
      %v365 = vadd.f32 %v254, %v364
      %366 = vmatmul.bf16.gmra.mxu0 %v287
      %v367 = vpop.f32.mrf.mxu0
      %v368 = vadd.f32 %v254, %v367
      %v369 = vpop.f32.mrf.mxu0
      %v370 = vadd.f32 %v254, %v369
      %371 = vmatmul.bf16.gmra.mxu0 %v290
      %v372 = vpop.f32.mrf.mxu0
      %v373 = vadd.f32 %v254, %v372
      %v374 = vpop.f32.mrf.mxu0
      %v375 = vadd.f32 %v254, %v374
      %376 = vmatmul.bf16.gmra.mxu0 %v293
      %v377 = vpop.f32.mrf.mxu0
      %v378 = vadd.f32 %v254, %v377
      %v379 = vpop.f32.mrf.mxu0
      %v380 = vadd.f32 %v254, %v379
      %381 = vmatmul.bf16.gmra.mxu0 %v296
      %v382 = vpop.f32.mrf.mxu0
      %v383 = vadd.f32 %v254, %v382
      %v384 = vpop.f32.mrf.mxu0
      %v385 = vadd.f32 %v254, %v384
      %386 = vmatmul.bf16.gmra.mxu0 %v299
      %v387 = vpop.f32.mrf.mxu0
      %v388 = vadd.f32 %v254, %v387
      %v389 = vpop.f32.mrf.mxu0
      %v390 = vadd.f32 %v254, %v389
      %391 = vmatmul.bf16.gmra.mxu0 %v302
      %v392 = vpop.f32.mrf.mxu0
      %v393 = vadd.f32 %v254, %v392
      %v394 = vpop.f32.mrf.mxu0
      %v395 = vadd.f32 %v254, %v394
      %396 = vdwg.mxu0
      %v397 = vmax.f32 %v318, 0.0
      %v398 = vmax.f32 %v320, 0.0
      %v399 = vmax.f32 %v323, 0.0
      %v400 = vmax.f32 %v325, 0.0
      %v401 = vmax.f32 %v328, 0.0
      %v402 = vmax.f32 %v330, 0.0
      %v403 = vmax.f32 %v333, 0.0
      %v404 = vmax.f32 %v335, 0.0
      %v405 = vmax.f32 %v338, 0.0
      %v406 = vmax.f32 %v340, 0.0
      %v407 = vmax.f32 %v343, 0.0
      %v408 = vmax.f32 %v345, 0.0
      %v409 = vmax.f32 %v348, 0.0
      %v410 = vmax.f32 %v350, 0.0
      %v411 = vmax.f32 %v353, 0.0
      %v412 = vmax.f32 %v355, 0.0
      %v413 = vmax.f32 %v358, 0.0
      %v414 = vmax.f32 %v360, 0.0
      %v415 = vmax.f32 %v363, 0.0
      %v416 = vmax.f32 %v365, 0.0
      %v417 = vmax.f32 %v368, 0.0
      %v418 = vmax.f32 %v370, 0.0
      %v419 = vmax.f32 %v373, 0.0
      %v420 = vmax.f32 %v375, 0.0
      %v421 = vmax.f32 %v378, 0.0
      %v422 = vmax.f32 %v380, 0.0
      %v423 = vmax.f32 %v383, 0.0
      %v424 = vmax.f32 %v385, 0.0
      %v425 = vmax.f32 %v388, 0.0
      %v426 = vmax.f32 %v390, 0.0
      %v427 = vmax.f32 %v393, 0.0
      %v428 = vmax.f32 %v395, 0.0
      %v429 = vpack.c.bf16 %v398, %v397
      %v430 = vpack.c.bf16 %v400, %v399
      %v431 = vpack.c.bf16 %v402, %v401
      %v432 = vpack.c.bf16 %v404, %v403
      %v433 = vpack.c.bf16 %v406, %v405
      %v434 = vpack.c.bf16 %v408, %v407
      %v435 = vpack.c.bf16 %v410, %v409
      %v436 = vpack.c.bf16 %v412, %v411
      %v437 = vpack.c.bf16 %v414, %v413
      %v438 = vpack.c.bf16 %v416, %v415
      %v439 = vpack.c.bf16 %v418, %v417
      %v440 = vpack.c.bf16 %v420, %v419
      %v441 = vpack.c.bf16 %v422, %v421
      %v442 = vpack.c.bf16 %v424, %v423
      %v443 = vpack.c.bf16 %v426, %v425
      %v444 = vpack.c.bf16 %v428, %v427
      %v445 = vld [vmem:[%s3] sm:$0xf]
      %v446 = vld [vmem:[%s3 + $0x4] sm:$0xf]
      %v447 = vld [vmem:[%s3 + $0x8] sm:$0xf]
      %v448 = vld [vmem:[%s3 + $0xc] sm:$0xf]
      %v449 = vld [vmem:[%s3 + $0x10] sm:$0xf]
      %v450 = vld [vmem:[%s3 + $0x14] sm:$0xf]
      %v451 = vld [vmem:[%s3 + $0x18] sm:$0xf]
      %v452 = vld [vmem:[%s3 + $0x1c] sm:$0xf]
      %v453 = vld [vmem:[%s3 + $0x20] sm:$0xf]
      %v454 = vld [vmem:[%s3 + $0x24] sm:$0xf]
      %v455 = vld [vmem:[%s3 + $0x28] sm:$0xf]
      %v456 = vld [vmem:[%s3 + $0x2c] sm:$0xf]
      %v457 = vld [vmem:[%s3 + $0x30] sm:$0xf]
      %v458 = vld [vmem:[%s3 + $0x34] sm:$0xf]
      %v459 = vld [vmem:[%s3 + $0x38] sm:$0xf]
      %v460 = vld [vmem:[%s3 + $0x3c] sm:$0xf]
      %v461 = vperm.slane %v251, 0
      %v478 = vunpack.c.l.b16 %v445
      %v479 = vunpack.c.l.b16 %v446
      %v480 = vunpack.c.l.b16 %v447
      %v481 = vunpack.c.l.b16 %v448
      %v482 = vunpack.c.l.b16 %v449
      %v483 = vunpack.c.l.b16 %v450
      %v484 = vunpack.c.l.b16 %v451
      %v485 = vunpack.c.l.b16 %v452
      %v486 = vunpack.c.l.b16 %v453
      %v487 = vunpack.c.l.b16 %v454
      %v488 = vunpack.c.l.b16 %v455
      %v489 = vunpack.c.l.b16 %v456
      %v490 = vunpack.c.l.b16 %v457
      %v491 = vunpack.c.l.b16 %v458
      %v492 = vunpack.c.l.b16 %v459
      %v493 = vunpack.c.l.b16 %v460
      %v494 = vpack.c.b16 %v479, %v478
      %v495 = vpack.c.b16 %v481, %v480
      %v496 = vpack.c.b16 %v483, %v482
      %v497 = vpack.c.b16 %v485, %v484
      %v498 = vpack.c.b16 %v487, %v486
      %v499 = vpack.c.b16 %v489, %v488
      %v500 = vpack.c.b16 %v491, %v490
      %v501 = vpack.c.b16 %v493, %v492
      %510 = vmatpush.bf16.msra.mxu0 %v501
      %511 = vmatpush.bf16.msra.mxu0 %v500
      %512 = vmatpush.bf16.msra.mxu0 %v499
      %513 = vmatpush.bf16.msra.mxu0 %v498
      %514 = vmatpush.bf16.msra.mxu0 %v497
      %515 = vmatpush.bf16.msra.mxu0 %v496
      %516 = vmatpush.bf16.msra.mxu0 %v495
      %517 = vmatpush.bf16.msra.mxu0 %v494
      %518 = vmatmul.bf16.gmra.mxu0 %v429
      %v519 = vpop.f32.mrf.mxu0
      %v520 = vadd.f32 %v461, %v519
      %v521 = vpop.f32.mrf.mxu0
      %v522 = vadd.f32 %v461, %v521
      %523 = vmatmul.bf16.gmra.mxu0 %v430
      %v524 = vpop.f32.mrf.mxu0
      %v525 = vadd.f32 %v461, %v524
      %v526 = vpop.f32.mrf.mxu0
      %v527 = vadd.f32 %v461, %v526
      %528 = vmatmul.bf16.gmra.mxu0 %v431
      %v529 = vpop.f32.mrf.mxu0
      %v530 = vadd.f32 %v461, %v529
      %v531 = vpop.f32.mrf.mxu0
      %v532 = vadd.f32 %v461, %v531
      %533 = vmatmul.bf16.gmra.mxu0 %v432
      %v534 = vpop.f32.mrf.mxu0
      %v535 = vadd.f32 %v461, %v534
      %v536 = vpop.f32.mrf.mxu0
      %v537 = vadd.f32 %v461, %v536
      %538 = vmatmul.bf16.gmra.mxu0 %v433
      %v539 = vpop.f32.mrf.mxu0
      %v540 = vadd.f32 %v461, %v539
      %v541 = vpop.f32.mrf.mxu0
      %v542 = vadd.f32 %v461, %v541
      %543 = vmatmul.bf16.gmra.mxu0 %v434
      %v544 = vpop.f32.mrf.mxu0
      %v545 = vadd.f32 %v461, %v544
      %v546 = vpop.f32.mrf.mxu0
      %v547 = vadd.f32 %v461, %v546
      %548 = vmatmul.bf16.gmra.mxu0 %v435
      %v549 = vpop.f32.mrf.mxu0
      %v550 = vadd.f32 %v461, %v549
      %v551 = vpop.f32.mrf.mxu0
      %v552 = vadd.f32 %v461, %v551
      %553 = vmatmul.bf16.gmra.mxu0 %v436
      %v554 = vpop.f32.mrf.mxu0
      %v555 = vadd.f32 %v461, %v554
      %v556 = vpop.f32.mrf.mxu0
      %v557 = vadd.f32 %v461, %v556
      %558 = vmatmul.bf16.gmra.mxu0 %v437
      %v559 = vpop.f32.mrf.mxu0
      %v560 = vadd.f32 %v461, %v559
      %v561 = vpop.f32.mrf.mxu0
      %v562 = vadd.f32 %v461, %v561
      %563 = vmatmul.bf16.gmra.mxu0 %v438
      %v564 = vpop.f32.mrf.mxu0
      %v565 = vadd.f32 %v461, %v564
      %v566 = vpop.f32.mrf.mxu0
      %v567 = vadd.f32 %v461, %v566
      %568 = vmatmul.bf16.gmra.mxu0 %v439
      %v569 = vpop.f32.mrf.mxu0
      %v570 = vadd.f32 %v461, %v569
      %v571 = vpop.f32.mrf.mxu0
      %v572 = vadd.f32 %v461, %v571
      %573 = vmatmul.bf16.gmra.mxu0 %v440
      %v574 = vpop.f32.mrf.mxu0
      %v575 = vadd.f32 %v461, %v574
      %v576 = vpop.f32.mrf.mxu0
      %v577 = vadd.f32 %v461, %v576
      %578 = vmatmul.bf16.gmra.mxu0 %v441
      %v579 = vpop.f32.mrf.mxu0
      %v580 = vadd.f32 %v461, %v579
      %v581 = vpop.f32.mrf.mxu0
      %v582 = vadd.f32 %v461, %v581
      %583 = vmatmul.bf16.gmra.mxu0 %v442
      %v584 = vpop.f32.mrf.mxu0
      %v585 = vadd.f32 %v461, %v584
      %v586 = vpop.f32.mrf.mxu0
      %v587 = vadd.f32 %v461, %v586
      %588 = vmatmul.bf16.gmra.mxu0 %v443
      %v589 = vpop.f32.mrf.mxu0
      %v590 = vadd.f32 %v461, %v589
      %v591 = vpop.f32.mrf.mxu0
      %v592 = vadd.f32 %v461, %v591
      %593 = vmatmul.bf16.gmra.mxu0 %v444
      %v594 = vpop.f32.mrf.mxu0
      %v595 = vadd.f32 %v461, %v594
      %v596 = vpop.f32.mrf.mxu0
      %v597 = vadd.f32 %v461, %v596
      %598 = vdwg.mxu0
      %v599 = vmax.f32 %v520, 0.0
      %v600 = vmax.f32 %v522, 0.0
      %v601 = vmax.f32 %v525, 0.0
      %v602 = vmax.f32 %v527, 0.0
      %v603 = vmax.f32 %v530, 0.0
      %v604 = vmax.f32 %v532, 0.0
      %v605 = vmax.f32 %v535, 0.0
      %v606 = vmax.f32 %v537, 0.0
      %v607 = vmax.f32 %v540, 0.0
      %v608 = vmax.f32 %v542, 0.0
      %v609 = vmax.f32 %v545, 0.0
      %v610 = vmax.f32 %v547, 0.0
      %v611 = vmax.f32 %v550, 0.0
      %v612 = vmax.f32 %v552, 0.0
      %v613 = vmax.f32 %v555, 0.0
      %v614 = vmax.f32 %v557, 0.0
      %v615 = vmax.f32 %v560, 0.0
      %v616 = vmax.f32 %v562, 0.0
      %v617 = vmax.f32 %v565, 0.0
      %v618 = vmax.f32 %v567, 0.0
      %v619 = vmax.f32 %v570, 0.0
      %v620 = vmax.f32 %v572, 0.0
      %v621 = vmax.f32 %v575, 0.0
      %v622 = vmax.f32 %v577, 0.0
      %v623 = vmax.f32 %v580, 0.0
      %v624 = vmax.f32 %v582, 0.0
      %v625 = vmax.f32 %v585, 0.0
      %v626 = vmax.f32 %v587, 0.0
      %v627 = vmax.f32 %v590, 0.0
      %v628 = vmax.f32 %v592, 0.0
      %v629 = vmax.f32 %v595, 0.0
      %v630 = vmax.f32 %v597, 0.0
      %v631 = vpack.c.bf16 %v600, %v599
      %v632 = vpack.c.bf16 %v602, %v601
      %v633 = vpack.c.bf16 %v604, %v603
      %v634 = vpack.c.bf16 %v606, %v605
      %v635 = vpack.c.bf16 %v608, %v607
      %v636 = vpack.c.bf16 %v610, %v609
      %v637 = vpack.c.bf16 %v612, %v611
      %v638 = vpack.c.bf16 %v614, %v613
      %v639 = vpack.c.bf16 %v616, %v615
      %v640 = vpack.c.bf16 %v618, %v617
      %v641 = vpack.c.bf16 %v620, %v619
      %v642 = vpack.c.bf16 %v622, %v621
      %v643 = vpack.c.bf16 %v624, %v623
      %v644 = vpack.c.bf16 %v626, %v625
      %v645 = vpack.c.bf16 %v628, %v627
      %v646 = vpack.c.bf16 %v630, %v629
      %s647 = scalar_lea.vmem %s3, 64
      %v648 = vld [vmem:[%s647] sm:$0xf]
      %v649 = vld [vmem:[%s647 + $0x4] sm:$0xf]
      %v650 = vld [vmem:[%s647 + $0x8] sm:$0xf]
      %v651 = vld [vmem:[%s647 + $0xc] sm:$0xf]
      %v652 = vld [vmem:[%s647 + $0x10] sm:$0xf]
      %v653 = vld [vmem:[%s647 + $0x14] sm:$0xf]
      %v654 = vld [vmem:[%s647 + $0x18] sm:$0xf]
      %v655 = vld [vmem:[%s647 + $0x1c] sm:$0xf]
      %v656 = vld [vmem:[%s647 + $0x20] sm:$0xf]
      %v657 = vld [vmem:[%s647 + $0x24] sm:$0xf]
      %v658 = vld [vmem:[%s647 + $0x28] sm:$0xf]
      %v659 = vld [vmem:[%s647 + $0x2c] sm:$0xf]
      %v660 = vld [vmem:[%s647 + $0x30] sm:$0xf]
      %v661 = vld [vmem:[%s647 + $0x34] sm:$0xf]
      %v662 = vld [vmem:[%s647 + $0x38] sm:$0xf]
      %v663 = vld [vmem:[%s647 + $0x3c] sm:$0xf]
      %v664 = vperm.slane %v252, 0
      %v681 = vunpack.c.l.b16 %v648
      %v682 = vunpack.c.l.b16 %v649
      %v683 = vunpack.c.l.b16 %v650
      %v684 = vunpack.c.l.b16 %v651
      %v685 = vunpack.c.l.b16 %v652
      %v686 = vunpack.c.l.b16 %v653
      %v687 = vunpack.c.l.b16 %v654
      %v688 = vunpack.c.l.b16 %v655
      %v689 = vunpack.c.l.b16 %v656
      %v690 = vunpack.c.l.b16 %v657
      %v691 = vunpack.c.l.b16 %v658
      %v692 = vunpack.c.l.b16 %v659
      %v693 = vunpack.c.l.b16 %v660
      %v694 = vunpack.c.l.b16 %v661
      %v695 = vunpack.c.l.b16 %v662
      %v696 = vunpack.c.l.b16 %v663
      %v697 = vpack.c.b16 %v682, %v681
      %v698 = vpack.c.b16 %v684, %v683
      %v699 = vpack.c.b16 %v686, %v685
      %v700 = vpack.c.b16 %v688, %v687
      %v701 = vpack.c.b16 %v690, %v689
      %v702 = vpack.c.b16 %v692, %v691
      %v703 = vpack.c.b16 %v694, %v693
      %v704 = vpack.c.b16 %v696, %v695
      %713 = vmatpush.bf16.msra.mxu0 %v704
      %714 = vmatpush.bf16.msra.mxu0 %v703
      %715 = vmatpush.bf16.msra.mxu0 %v702
      %716 = vmatpush.bf16.msra.mxu0 %v701
      %717 = vmatpush.bf16.msra.mxu0 %v700
      %718 = vmatpush.bf16.msra.mxu0 %v699
      %719 = vmatpush.bf16.msra.mxu0 %v698
      %720 = vmatpush.bf16.msra.mxu0 %v697
      %721 = vmatmul.bf16.gmra.mxu0 %v631
      %v722 = vpop.f32.mrf.mxu0
      %v723 = vadd.f32 %v664, %v722
      %v724 = vpop.f32.mrf.mxu0
      %v725 = vadd.f32 %v664, %v724
      %726 = vmatmul.bf16.gmra.mxu0 %v632
      %v727 = vpop.f32.mrf.mxu0
      %v728 = vadd.f32 %v664, %v727
      %v729 = vpop.f32.mrf.mxu0
      %v730 = vadd.f32 %v664, %v729
      %731 = vmatmul.bf16.gmra.mxu0 %v633
      %v732 = vpop.f32.mrf.mxu0
      %v733 = vadd.f32 %v664, %v732
      %v734 = vpop.f32.mrf.mxu0
      %v735 = vadd.f32 %v664, %v734
      %736 = vmatmul.bf16.gmra.mxu0 %v634
      %v737 = vpop.f32.mrf.mxu0
      %v738 = vadd.f32 %v664, %v737
      %v739 = vpop.f32.mrf.mxu0
      %v740 = vadd.f32 %v664, %v739
      %741 = vmatmul.bf16.gmra.mxu0 %v635
      %v742 = vpop.f32.mrf.mxu0
      %v743 = vadd.f32 %v664, %v742
      %v744 = vpop.f32.mrf.mxu0
      %v745 = vadd.f32 %v664, %v744
      %746 = vmatmul.bf16.gmra.mxu0 %v636
      %v747 = vpop.f32.mrf.mxu0
      %v748 = vadd.f32 %v664, %v747
      %v749 = vpop.f32.mrf.mxu0
      %v750 = vadd.f32 %v664, %v749
      %751 = vmatmul.bf16.gmra.mxu0 %v637
      %v752 = vpop.f32.mrf.mxu0
      %v753 = vadd.f32 %v664, %v752
      %v754 = vpop.f32.mrf.mxu0
      %v755 = vadd.f32 %v664, %v754
      %756 = vmatmul.bf16.gmra.mxu0 %v638
      %v757 = vpop.f32.mrf.mxu0
      %v758 = vadd.f32 %v664, %v757
      %v759 = vpop.f32.mrf.mxu0
      %v760 = vadd.f32 %v664, %v759
      %761 = vmatmul.bf16.gmra.mxu0 %v639
      %v762 = vpop.f32.mrf.mxu0
      %v763 = vadd.f32 %v664, %v762
      %v764 = vpop.f32.mrf.mxu0
      %v765 = vadd.f32 %v664, %v764
      %766 = vmatmul.bf16.gmra.mxu0 %v640
      %v767 = vpop.f32.mrf.mxu0
      %v768 = vadd.f32 %v664, %v767
      %v769 = vpop.f32.mrf.mxu0
      %v770 = vadd.f32 %v664, %v769
      %771 = vmatmul.bf16.gmra.mxu0 %v641
      %v772 = vpop.f32.mrf.mxu0
      %v773 = vadd.f32 %v664, %v772
      %v774 = vpop.f32.mrf.mxu0
      %v775 = vadd.f32 %v664, %v774
      %776 = vmatmul.bf16.gmra.mxu0 %v642
      %v777 = vpop.f32.mrf.mxu0
      %v778 = vadd.f32 %v664, %v777
      %v779 = vpop.f32.mrf.mxu0
      %v780 = vadd.f32 %v664, %v779
      %781 = vmatmul.bf16.gmra.mxu0 %v643
      %v782 = vpop.f32.mrf.mxu0
      %v783 = vadd.f32 %v664, %v782
      %v784 = vpop.f32.mrf.mxu0
      %v785 = vadd.f32 %v664, %v784
      %786 = vmatmul.bf16.gmra.mxu0 %v644
      %v787 = vpop.f32.mrf.mxu0
      %v788 = vadd.f32 %v664, %v787
      %v789 = vpop.f32.mrf.mxu0
      %v790 = vadd.f32 %v664, %v789
      %791 = vmatmul.bf16.gmra.mxu0 %v645
      %v792 = vpop.f32.mrf.mxu0
      %v793 = vadd.f32 %v664, %v792
      %v794 = vpop.f32.mrf.mxu0
      %v795 = vadd.f32 %v664, %v794
      %796 = vmatmul.bf16.gmra.mxu0 %v646
      %v797 = vpop.f32.mrf.mxu0
      %v798 = vadd.f32 %v664, %v797
      %v799 = vpop.f32.mrf.mxu0
      %v800 = vadd.f32 %v664, %v799
      %801 = vdwg.mxu0
      %vm802 = vcmask 15360
      %803 = vst.msk [vmem:[%s199] sm:$0xff] %vm802, %v723
      %804 = vst.msk [vmem:[%s199 + $0x8] sm:$0xff] %vm802, %v725
      %805 = vst.msk [vmem:[%s199 + $0x10] sm:$0xff] %vm802, %v728
      %806 = vst.msk [vmem:[%s199 + $0x18] sm:$0xff] %vm802, %v730
      %807 = vst.msk [vmem:[%s199 + $0x20] sm:$0xff] %vm802, %v733
      %808 = vst.msk [vmem:[%s199 + $0x28] sm:$0xff] %vm802, %v735
      %809 = vst.msk [vmem:[%s199 + $0x30] sm:$0xff] %vm802, %v738
      %810 = vst.msk [vmem:[%s199 + $0x38] sm:$0xff] %vm802, %v740
      %811 = vst.msk [vmem:[%s199 + $0x40] sm:$0xff] %vm802, %v743
      %812 = vst.msk [vmem:[%s199 + $0x48] sm:$0xff] %vm802, %v745
      %813 = vst.msk [vmem:[%s199 + $0x50] sm:$0xff] %vm802, %v748
      %814 = vst.msk [vmem:[%s199 + $0x58] sm:$0xff] %vm802, %v750
      %815 = vst.msk [vmem:[%s199 + $0x60] sm:$0xff] %vm802, %v753
      %816 = vst.msk [vmem:[%s199 + $0x68] sm:$0xff] %vm802, %v755
      %817 = vst.msk [vmem:[%s199 + $0x70] sm:$0xff] %vm802, %v758
      %818 = vst.msk [vmem:[%s199 + $0x78] sm:$0xff] %vm802, %v760
      %819 = vst.msk [vmem:[%s199 + $0x80] sm:$0xff] %vm802, %v763
      %820 = vst.msk [vmem:[%s199 + $0x88] sm:$0xff] %vm802, %v765
      %821 = vst.msk [vmem:[%s199 + $0x90] sm:$0xff] %vm802, %v768
      %822 = vst.msk [vmem:[%s199 + $0x98] sm:$0xff] %vm802, %v770
      %823 = vst.msk [vmem:[%s199 + $0xa0] sm:$0xff] %vm802, %v773
      %824 = vst.msk [vmem:[%s199 + $0xa8] sm:$0xff] %vm802, %v775
      %825 = vst.msk [vmem:[%s199 + $0xb0] sm:$0xff] %vm802, %v778
      %826 = vst.msk [vmem:[%s199 + $0xb8] sm:$0xff] %vm802, %v780
      %827 = vst.msk [vmem:[%s199 + $0xc0] sm:$0xff] %vm802, %v783
      %828 = vst.msk [vmem:[%s199 + $0xc8] sm:$0xff] %vm802, %v785
      %829 = vst.msk [vmem:[%s199 + $0xd0] sm:$0xff] %vm802, %v788
      %830 = vst.msk [vmem:[%s199 + $0xd8] sm:$0xff] %vm802, %v790
      %831 = vst.msk [vmem:[%s199 + $0xe0] sm:$0xff] %vm802, %v793
      %832 = vst.msk [vmem:[%s199 + $0xe8] sm:$0xff] %vm802, %v795
      %833 = vst.msk [vmem:[%s199 + $0xf0] sm:$0xff] %vm802, %v798
      %834 = vst.msk [vmem:[%s199 + $0xf8] sm:$0xff] %vm802, %v800
      %s835 = smul.u32 32, %s15
      %p836 = scmp.lt.s32.totalorder %s835, 63
      %s837 = scalar_select %p836, %s835, 63
      %s838 = smul.addr %s837, 8
      %s839 = scalar_lea.vmem %s4, %s838
      // Predicated region
      $region37: #{tpu_custom_call.1} parent=35 // pred_check
        %p840 = pneg %p122
      $region38: #{tpu_custom_call.1} parent=35 // pred_check_branch
        %842 = sbr.rel (%p840) target = $region40
      $region39: #{tpu_custom_call.1} parent=35 // pred_region
        %s843 = smul.u32 32, %s15
      $region40: #{tpu_custom_call.1} parent=35 // pred_fallthru
        _
    $region36: #{tpu_custom_call.1} parent=5 // pred_fallthru
      _
    %p844 = scmp.le.s32.totalorder 2, %s10
    // Predicated region
    $region41: #{tpu_custom_call.1} parent=5 // pred_check
      %p845 = pneg %p844
    $region42: #{tpu_custom_call.1} parent=5 // pred_check_branch
      %847 = sbr.rel (%p845) target = $region44
    $region43: #{tpu_custom_call.1} parent=5 // pred_region
      %s848 = ssub.s32 %s10, 2
      // Predicated region
      $region45: #{tpu_custom_call.1} parent=43 // pred_check
        %p849 = pneg %p128
      $region46: #{tpu_custom_call.1} parent=43 // pred_check_branch
        %851 = sbr.rel (%p849) target = $region48
      $region47: #{tpu_custom_call.1} parent=43 // pred_region
        %s852 = smul.u32 32, %s16
        %p853 = scmp.lt.s32.totalorder %s852, 63
        %s854 = scalar_select %p853, %s852, 63
        %s855 = smul.addr %s854, 8
        %s856 = scalar_lea.vmem %s4, %s855
      $region48: #{tpu_custom_call.1} parent=43 // pred_fallthru
        _
    $region44: #{tpu_custom_call.1} parent=5 // pred_fallthru
      _
  $region6: #{tpu_custom_call.1} parent=0 // loop_footer
    %s14 = sadd.s32 1, %s10
  $region7: #{tpu_custom_call.1} parent=0 // loop_footer_branch
    %9 = sbr.rel target = $region3
  $region8: #{tpu_custom_call.1} parent=0 // loop_exit
    _

</llo_original>
